<compile_context>
chip_gen: v7x
topology: tpu7x:2x2x1
jax: 0.10.0
libtpu: 0.0.40
codegen_flags: <defaults>
</compile_context>

<pallas_src>
import jax
import jax.numpy as jnp
from jax.experimental import pallas as pl
from jax.experimental.pallas import tpu as pltpu


def _mae_kernel(x_ref, label_ref, o_ref):
    # Elementwise hot path on the whole VMEM tile: 2 - 2 * x * label.
    # Weakly-typed Python constants keep the arithmetic in the input dtype.
    o_ref[...] = 2.0 - 2.0 * x_ref[...] * label_ref[...]


_LANE_CANDIDATES = (2048, 1024, 512, 256, 128)   # lane-dense last dims
_TARGET_TILE_BYTES = 2 * 1024 * 1024             # ~2 MiB per input tile
_SMALL_ELEMS = 256 * 1024                        # below this, plain JAX wins


def _sublane_multiple(dtype):
    # f32 -> 8, bf16 -> 16, int8/fp8 -> 32 (sub-32-bit dtypes pack along sublanes).
    itemsize = jnp.dtype(dtype).itemsize
    return 8 * max(1, 4 // max(itemsize, 1))


def mae_forward(x, label, *, min_pallas_elems=_SMALL_ELEMS):
    """Pallas implementation of MAE.forward(x, label) = 2 - 2*x*label."""
    assert x.shape == label.shape, "x and label must have the same shape"
    orig_shape = x.shape
    dtype = x.dtype
    total = int(x.size)

    # Fast path: empty, tiny, or element counts not alignable to 128 lanes.
    if total == 0 or total < min_pallas_elems or total % 128 != 0:
        return (2.0 - 2.0 * x * label).astype(dtype)

    # Lane-dense flatten: last dim is the largest candidate multiple of 128
    # that divides the element count.
    lane = 128
    for cand in _LANE_CANDIDATES:
        if total % cand == 0:
            lane = cand
            break
    rows = total // lane

    x2 = x.reshape(rows, lane)
    l2 = label.reshape(rows, lane)

    # Tile rows so each input tile is ~2 MiB, rounded down to the dtype's
    # sublane-packing multiple.  If everything fits in one block, use it.
    itemsize = jnp.dtype(dtype).itemsize
    sub_mult = _sublane_multiple(dtype)
    tile_elems = max(_TARGET_TILE_BYTES // itemsize, lane * sub_mult)
    tile_rows = tile_elems // lane
    if tile_rows >= rows:
        tile_rows = rows                       # single full block along rows
    else:
        tile_rows = max((tile_rows // sub_mult) * sub_mult, sub_mult)

    grid = (pl.cdiv(rows, tile_rows),)

    out2 = pl.pallas_call(
        _mae_kernel,
        out_shape=jax.ShapeDtypeStruct((rows, lane), dtype),
        grid_spec=pltpu.PrefetchScalarGridSpec(
            num_scalar_prefetch=0,
            grid=grid,
            in_specs=[
                pl.BlockSpec((tile_rows, lane), lambda i: (i, 0)),
                pl.BlockSpec((tile_rows, lane), lambda i: (i, 0)),
            ],
            out_specs=pl.BlockSpec((tile_rows, lane), lambda i: (i, 0)),
        ),
        compiler_params=pltpu.CompilerParams(
            dimension_semantics=("parallel",),   # megacore-shardable on v7x
            vmem_limit_bytes=48 * 1024 * 1024,   # 3 arrays x 2 bufs x ~2 MiB
        ),
    )(x2, l2)

    return out2.reshape(orig_shape)


if __name__ == "__main__":
    key = jax.random.PRNGKey(0)
    kx, kl = jax.random.split(key)

    # Small NCHW shape consistent with typical use of this module.
    B, C, H, W = 2, 4, 16, 16
    x = jax.random.normal(kx, (B, C, H, W), dtype=jnp.float32)
    label = jax.random.normal(kl, (B, C, H, W), dtype=jnp.float32)
    ref = 2.0 - 2.0 * x * label

    # 1) Default dispatch (tiny tensor -> fused plain-JAX fast path).
    out = jax.block_until_ready(mae_forward(x, label))
    assert out.shape == (B, C, H, W)
    assert jnp.allclose(out, ref, atol=1e-6, rtol=1e-6)

    # 2) Force the Pallas kernel on the same small shape (single lane-dense block).
    out_k = jax.block_until_ready(mae_forward(x, label, min_pallas_elems=0))
    assert out_k.shape == (B, C, H, W)
    assert out_k.dtype == x.dtype
    assert jnp.allclose(out_k, ref, atol=1e-6, rtol=1e-6)

    # 3) Modest shape that exercises the multi-step pipelined grid (4 MiB/array).
    km1, km2 = jax.random.split(jax.random.PRNGKey(1))
    xm = jax.random.normal(km1, (8, 8, 128, 128), dtype=jnp.float32)
    lm = jax.random.normal(km2, (8, 8, 128, 128), dtype=jnp.float32)
    out_m = jax.block_until_ready(mae_forward(xm, lm, min_pallas_elems=0))
    ref_m = 2.0 - 2.0 * xm * lm
    assert jnp.allclose(out_m, ref_m, atol=1e-6, rtol=1e-6)

    print("KERNEL_OK")
</pallas_src>

<mosaic_0001>
module attributes {stable_mosaic.version = 11 : i64} {
  func.func @_mae_kernel(%arg0: i32, %arg1: memref<1x2048xf32, #tpu.memory_space<vmem>>, %arg2: memref<1x2048xf32, #tpu.memory_space<vmem>>, %arg3: memref<1x2048xf32, #tpu.memory_space<vmem>>) attributes {dimension_semantics = [#tpu.dimension_semantics<parallel>], iteration_bounds = array<i64: 1>, scalar_prefetch = 0 : i64, scratch_operands = 0 : i64, tpu.core_type = #tpu.core_type<tc>, window_params = [{transform_indices = @transform_0, window_bounds = array<i64: 1, 2048>}, {transform_indices = @transform_1, window_bounds = array<i64: 1, 2048>}, {transform_indices = @transform_2, window_bounds = array<i64: 1, 2048>}]} {
    %c0 = arith.constant 0 : index
    %c0_0 = arith.constant 0 : index
    %0 = vector.load %arg1[%c0, %c0_0] : memref<1x2048xf32, #tpu.memory_space<vmem>>, vector<1x2048xf32>
    %cst = arith.constant 2.000000e+00 : f32
    %1 = vector.broadcast %cst : f32 to vector<1x2048xf32>
    %2 = arith.mulf %1, %0 : vector<1x2048xf32>
    %c0_1 = arith.constant 0 : index
    %c0_2 = arith.constant 0 : index
    %3 = vector.load %arg2[%c0_1, %c0_2] : memref<1x2048xf32, #tpu.memory_space<vmem>>, vector<1x2048xf32>
    %4 = arith.mulf %2, %3 : vector<1x2048xf32>
    %cst_3 = arith.constant 2.000000e+00 : f32
    %5 = vector.broadcast %cst_3 : f32 to vector<1x2048xf32>
    %6 = arith.subf %5, %4 : vector<1x2048xf32>
    %c0_4 = arith.constant 0 : index
    %c0_5 = arith.constant 0 : index
    %7 = vector.load %arg3[%c0_4, %c0_5] : memref<1x2048xf32, #tpu.memory_space<vmem>>, vector<1x2048xf32>
    tpu.vector_store %arg3[%c0_4, %c0_5], %6 {strides = array<i32>} : memref<1x2048xf32, #tpu.memory_space<vmem>>, vector<1x2048xf32>,
    return
  }
  func.func @transform_0(%arg0: i32) -> (i32, i32) {
    %c0_i32 = arith.constant 0 : i32
    %c0_i32_0 = arith.constant 0 : i32
    return %arg0, %c0_i32 : i32, i32
  }
  func.func @transform_1(%arg0: i32) -> (i32, i32) {
    %c0_i32 = arith.constant 0 : i32
    %c0_i32_0 = arith.constant 0 : i32
    return %arg0, %c0_i32 : i32, i32
  }
  func.func @transform_2(%arg0: i32) -> (i32, i32) {
    %c0_i32 = arith.constant 0 : i32
    %c0_i32_0 = arith.constant 0 : i32
    return %arg0, %c0_i32 : i32, i32
  }
}

</mosaic_0001>

<llo_original>
// kernel: tpu_custom_call.1
$region0: #{tpu_custom_call.1}
  #allocation0 [shape = 'u32[]', space=smem, size = 0x4, offset = 0x4, fixed_abs, tag = 'smem constant byte address 0x4 - core index']
  #allocation1 [shape = 'u32[144,128]{1,0:T(1,128)}', space=vmem, size = 0x12000, scoped, tag = 'internal scratch']
  %s0 = inlined_call_operand.hbm [shape: f32[1,2048], index: 0, kind: input, shape index: {}]
  %s1 = inlined_call_operand.hbm [shape: f32[1,2048], index: 1, kind: input, shape index: {}]
  %s2 = inlined_call_operand.hbm [shape: f32[1,2048], index: 2, kind: output, shape index: {}]
  %s3 = sld [smem:[#allocation0]]
  $region26: #{tpu_custom_call.1} parent=0
    _
  %s5 = ssub.s32 1, %s3
  %s6 = scalar_select 0, %s5, %s3
  $region1: #{tpu_custom_call.1} parent=0
    #allocation2 [shape = 'u8[8192]{0}', space=vmem, size = 0x2000, scoped, tag = 'input window, operand 0, single buffered']
    #allocation3 [shape = 's32[1]{0}', space=sflag, size = 0x4, scoped, tag = 'scoped memory for tpu_custom_call.1']
    #allocation4 [shape = 's32[1]{0}', space=sflag, size = 0x4, scoped, tag = 'scoped memory for tpu_custom_call.1']
    #allocation5 [shape = 'u8[8192]{0}', space=vmem, size = 0x2000, scoped, tag = 'input window, operand 1, single buffered']
    #allocation6 [shape = 's32[1]{0}', space=sflag, size = 0x4, scoped, tag = 'scoped memory for tpu_custom_call.1']
    #allocation7 [shape = 'u8[8192]{0}', space=vmem, size = 0x2000, scoped, tag = 'output window, operand 0, single buffered']
    %7 = vsyncpa [#allocation3], 0
    %8 = vsyncpa [#allocation6], 0
    %9 = vsyncpa [#allocation4], 0
    // Predicated region
    $region2: #{tpu_custom_call.1} parent=1 // pred_check
      _
    $region3: #{tpu_custom_call.1} parent=1 // pred_check_branch
      %11 = sbr.rel (0) target = $region5
    $region4: #{tpu_custom_call.1} parent=1 // pred_region
      %s13 = ssub.s32 256, 256
      %14 = vsyncadd [#allocation3], %s13
      %s16 = sshll.u32 [#allocation2], 4
      %s17 = int_to_ptr.vmem [resolvable:$true] %s16
      %19 = dma.hbm_to_vmem [thread:$0]  %s0, 256, %s17, [#allocation3]
    $region5: #{tpu_custom_call.1} parent=1 // pred_fallthru
      _
    // Predicated region
    $region6: #{tpu_custom_call.1} parent=1 // pred_check
      _
    $region7: #{tpu_custom_call.1} parent=1 // pred_check_branch
      %21 = sbr.rel (0) target = $region9
    $region8: #{tpu_custom_call.1} parent=1 // pred_region
      %s23 = ssub.s32 256, 256
      %24 = vsyncadd [#allocation6], %s23
      %s26 = sshll.u32 [#allocation5], 4
      %s27 = int_to_ptr.vmem [resolvable:$true] %s26
      %29 = dma.hbm_to_vmem [thread:$0]  %s1, 256, %s27, [#allocation6]
    $region9: #{tpu_custom_call.1} parent=1 // pred_fallthru
      _
    // Predicated region
    $region10: #{tpu_custom_call.1} parent=1 // pred_check
      _
    $region11: #{tpu_custom_call.1} parent=1 // pred_check_branch
      %31 = sbr.rel (0) target = $region13
    $region12: #{tpu_custom_call.1} parent=1 // pred_region
      %32 = dma.done [#allocation3], 256
    $region13: #{tpu_custom_call.1} parent=1 // pred_fallthru
      _
    // Predicated region
    $region14: #{tpu_custom_call.1} parent=1 // pred_check
      _
    $region15: #{tpu_custom_call.1} parent=1 // pred_check_branch
      %34 = sbr.rel (0) target = $region17
    $region16: #{tpu_custom_call.1} parent=1 // pred_region
      %35 = dma.done [#allocation6], 256
    $region17: #{tpu_custom_call.1} parent=1 // pred_fallthru
      _
    %v36 = vld [vmem:[#allocation2] sm:$0xff]
    %v37 = vld [vmem:[#allocation2 + $0x8] sm:$0xff]
    %v38 = vmul.f32 %v36, 2.0
    %v39 = vmul.f32 %v37, 2.0
    %v40 = vld [vmem:[#allocation5] sm:$0xff]
    %v41 = vld [vmem:[#allocation5 + $0x8] sm:$0xff]
    %v42 = vmul.f32 %v38, %v40
    %v43 = vmul.f32 %v39, %v41
    %v44 = vsub.f32 2.0, %v42
    %v45 = vsub.f32 2.0, %v43
    %46 = vst [vmem:[#allocation7] sm:$0xff] %v44
    %47 = vst [vmem:[#allocation7 + $0x8] sm:$0xff] %v45
    // Predicated region
    $region18: #{tpu_custom_call.1} parent=1 // pred_check
      _
    $region19: #{tpu_custom_call.1} parent=1 // pred_check_branch
      %49 = sbr.rel (0) target = $region21
    $region20: #{tpu_custom_call.1} parent=1 // pred_region
      %s51 = ssub.s32 256, 256
      %52 = vsyncadd [#allocation4], %s51
      %s54 = sshll.u32 [#allocation7], 4
      %s55 = int_to_ptr.vmem [resolvable:$true] %s54
      %57 = dma.vmem_to_hbm [thread:$0]  %s55, 256, %s2, [#allocation4]
    $region21: #{tpu_custom_call.1} parent=1 // pred_fallthru
      _
    // Predicated region
    $region22: #{tpu_custom_call.1} parent=1 // pred_check
      _
    $region23: #{tpu_custom_call.1} parent=1 // pred_check_branch
      %59 = sbr.rel (0) target = $region25
    $region24: #{tpu_custom_call.1} parent=1 // pred_region
      %60 = dma.done [#allocation4], 256
    $region25: #{tpu_custom_call.1} parent=1 // pred_fallthru
      _
    %61 = vsyncpa [#allocation3], 1
    %62 = vsyncpa [#allocation6], 1
    %63 = vsyncpa [#allocation4], 1

</llo_original>
